<compile_context>
chip_gen: v6e
topology: v6e:2x2x1
jax: 0.10.0
libtpu: 0.0.40
codegen_flags: <defaults>
</compile_context>

<pallas_src>
import jax
import jax.numpy as jnp
import numpy as np
from jax import lax
from jax.experimental import pallas as pl
from jax.experimental.pallas import tpu as pltpu

VOCAB = 100000
EMBED = 64          # embed_size (lane axis of the activations)
KERNAL = 10         # filters per conv
CLASSES = 2
NKP = 128           # padded feature width: 3*KERNAL = 30 -> 128 lanes (lane-dense)
WIN = 5             # max conv window; conv3/conv4 are embedded in this window
FRONT_PAD = 2       # halo rows in front of every sequence (covers pad=1 and pad=2)


def _round_up(x, m):
    return ((x + m - 1) // m) * m


# ----------------------------------------------------------------------------
# Pallas kernel factory: conv(3/4/5) + ReLU + global max-pool + Linear
# ----------------------------------------------------------------------------
def make_cnn_kernel(TB, L, D):
    # Per-sequence scratch slot: 2 front zeros + L data rows + >=3 back zeros,
    # rounded up to 8 rows so per-sequence bases are sublane-aligned.
    Lp = _round_up(L + FRONT_PAD + 3, 8)
    M = TB * Lp                      # folded (batch * padded-time) matmul M dim
    K = KERNAL

    def kernel(e_ref, wcb_ref, wfb_ref, o_ref, e_sc):
        # ---- stage the (TB, L, D) block into the flat zero-padded scratch ----
        z_front = jnp.zeros((FRONT_PAD, D), jnp.float32)
        z_back = jnp.zeros((Lp - FRONT_PAD - L, D), jnp.float32)
        for b in range(TB):
            base = b * Lp
            e_sc[base:base + FRONT_PAD, :] = z_front
            e_sc[base + FRONT_PAD:base + FRONT_PAD + L, :] = e_ref[b]
            e_sc[base + FRONT_PAD + L:base + Lp, :] = z_back
        # Trailing rows so the r-shifted slices below stay in range.
        e_sc[M:M + (WIN - 1), :] = jnp.zeros((WIN - 1, D), jnp.float32)

        # ---- all three convs as WIN batch-folded matmuls vs packed weight ----
        # acc[m, :] = sum_r e_pad[m + r] @ Wc[r]   (conv3 occupies taps 1..3,
        # conv4 taps 0..3, conv5 taps 0..4; column groups [0:K)/[K:2K)/[2K:3K))
        acc = jnp.dot(e_sc[0:M, :], wcb_ref[0:D, :],
                      preferred_element_type=jnp.float32)
        for r in range(1, WIN):
            acc = acc + jnp.dot(e_sc[r:r + M, :],
                                wcb_ref[r * D:(r + 1) * D, :],
                                preferred_element_type=jnp.float32)
        bias = wcb_ref[WIN * D:WIN * D + 1, :]            # (1, NKP)
        acc = jnp.maximum(acc + bias, 0.0)                # bias + ReLU, (M, NKP)

        # ---- per-sequence global max-pool -------------------------------
        # Valid window positions: conv3/conv5 -> t in [0, L); conv4 -> [0, L+1).
        col = lax.broadcasted_iota(jnp.int32, (1, NKP), 1)
        conv4_cols = jnp.logical_and(col >= K, col < 2 * K)
        pooled_rows = []
        for b in range(TB):
            base = b * Lp
            head = jnp.max(acc[base:base + L, :], axis=0, keepdims=True)
            last = jnp.where(conv4_cols, acc[base + L:base + L + 1, :], 0.0)
            pooled_rows.append(jnp.maximum(head, last))
        pooled = jnp.concatenate(pooled_rows, axis=0)     # (TB, NKP)

        # ---- final Linear (packed weight rows + bias row) ---------------
        logits = (jnp.dot(pooled, wfb_ref[0:NKP, :],
                          preferred_element_type=jnp.float32)
                  + wfb_ref[NKP:NKP + 1, :])              # (TB, CLASSES)
        o_ref[...] = logits.astype(o_ref.dtype)

    return kernel, Lp, M


def cnn_logits_pallas(emb, wcb, wfb, *, tb=8):
    """emb: (B, L, D) float32 embedded tokens (unpadded)."""
    B, L, D = emb.shape
    TB = min(tb, B)
    Bp = _round_up(B, TB)
    if Bp != B:
        emb = jnp.pad(emb, ((0, Bp - B), (0, 0), (0, 0)))  # ragged-batch fill only

    kernel, Lp, M = make_cnn_kernel(TB, L, D)
    grid_spec = pltpu.PrefetchScalarGridSpec(
        num_scalar_prefetch=0,
        grid=(Bp // TB,),
        in_specs=[
            pl.BlockSpec((TB, L, D), lambda i: (i, 0, 0)),          # activations
            pl.BlockSpec((WIN * D + 1, NKP), lambda i: (0, 0)),     # packed conv W+b
            pl.BlockSpec((NKP + 1, CLASSES), lambda i: (0, 0)),     # packed head W+b
        ],
        out_specs=pl.BlockSpec((TB, CLASSES), lambda i: (i, 0)),    # per-step block
        scratch_shapes=[pltpu.VMEM((M + WIN - 1, D), jnp.float32)],
    )
    out = pl.pallas_call(
        kernel,
        out_shape=jax.ShapeDtypeStruct((Bp, CLASSES), jnp.float32),
        grid_spec=grid_spec,
        compiler_params=pltpu.CompilerParams(
            dimension_semantics=("parallel",)),   # batch axis shards across TCs (v7x)
    )(emb, wcb, wfb)
    return out[:B]


# ----------------------------------------------------------------------------
# Module wrapper: embedding lookup (glue), Pallas hot path, optional CE loss
# ----------------------------------------------------------------------------
def cnn_forward(x_tokens, y_labels, params, mode="train"):
    # TODO(synk): fuse the embedding gather into the kernel (scalar-prefetch the
    # token ids and per-row DMA from the HBM table) to avoid materializing the
    # (B, L, D) embedded tensor in HBM.
    emb = jnp.take(params["embed"], x_tokens, axis=0)            # (B, L, D)
    logits = cnn_logits_pallas(emb, params["wcb"], params["wfb"])
    if mode == "train":
        # nn.CrossEntropyLoss (mean reduction)
        lse = jax.nn.logsumexp(logits, axis=1)
        picked = jnp.take_along_axis(logits, y_labels[:, None], axis=1)[:, 0]
        return jnp.mean(lse - picked)
    return logits


# ----------------------------------------------------------------------------
# Parameter init + kernel-friendly packing
# ----------------------------------------------------------------------------
def pack_kernel_params(p):
    K, D, C = KERNAL, EMBED, CLASSES
    w3 = jnp.transpose(p["W3"][:, 0], (1, 2, 0))   # (3, D, K)
    w4 = jnp.transpose(p["W4"][:, 0], (1, 2, 0))   # (4, D, K)
    w5 = jnp.transpose(p["W5"][:, 0], (1, 2, 0))   # (5, D, K)

    # Packed conv weight: rows [r*D:(r+1)*D] = tap r, last row = bias.
    # conv3 (pad=1) sits at taps 1..3 of the 5-wide window, conv4 at 0..3,
    # conv5 at 0..4; columns [0:K) / [K:2K) / [2K:3K), rest zero-padded to 128.
    wcb = jnp.zeros((WIN * D + 1, NKP), jnp.float32)
    for j in range(3):
        wcb = wcb.at[(1 + j) * D:(2 + j) * D, 0:K].set(w3[j])
    for j in range(4):
        wcb = wcb.at[j * D:(j + 1) * D, K:2 * K].set(w4[j])
    for j in range(5):
        wcb = wcb.at[j * D:(j + 1) * D, 2 * K:3 * K].set(w5[j])
    wcb = wcb.at[WIN * D, 0:K].set(p["b3"])
    wcb = wcb.at[WIN * D, K:2 * K].set(p["b4"])
    wcb = wcb.at[WIN * D, 2 * K:3 * K].set(p["b5"])

    # Packed head: rows [0:NKP) = weight (zero for padded feature lanes),
    # row NKP = bias.
    wfb = jnp.zeros((NKP + 1, C), jnp.float32)
    wfb = wfb.at[0:3 * K, :].set(p["Wf"].T)
    wfb = wfb.at[NKP, :].set(p["bf"])
    return wcb, wfb


def init_params(key):
    ks = jax.random.split(key, 9)
    K, D, C = KERNAL, EMBED, CLASSES
    embed = jax.random.normal(ks[0], (VOCAB, D), jnp.float32)
    W3 = jax.random.normal(ks[1], (K, 1, 3, D), jnp.float32) * 0.05
    b3 = jax.random.normal(ks[2], (K,), jnp.float32) * 0.05
    W4 = jax.random.normal(ks[3], (K, 1, 4, D), jnp.float32) * 0.05
    b4 = jax.random.normal(ks[4], (K,), jnp.float32) * 0.05
    W5 = jax.random.normal(ks[5], (K, 1, 5, D), jnp.float32) * 0.05
    b5 = jax.random.normal(ks[6], (K,), jnp.float32) * 0.05
    Wf = jax.random.normal(ks[7], (C, 3 * K), jnp.float32) * 0.1
    bf = jax.random.normal(ks[8], (C,), jnp.float32) * 0.1
    params = dict(embed=embed, W3=W3, b3=b3, W4=W4, b4=b4, W5=W5, b5=b5,
                  Wf=Wf, bf=bf)
    params["wcb"], params["wfb"] = pack_kernel_params(params)
    return params


# ----------------------------------------------------------------------------
# Pure-JAX reference (lax.conv) for a correctness cross-check
# ----------------------------------------------------------------------------
def ref_main_task(x_tokens, params):
    emb = jnp.take(params["embed"], x_tokens, axis=0)[:, None, :, :]  # (B,1,L,D)

    def conv(x, W, b, pad):
        y = lax.conv_general_dilated(
            x, W, (1, 1), ((pad, pad), (0, 0)),
            dimension_numbers=("NCHW", "OIHW", "NCHW"))
        y = jax.nn.relu(y + b[None, :, None, None])
        return y[..., 0]                                     # (B, K, T)

    x3 = conv(emb, params["W3"], params["b3"], 1)
    x4 = conv(emb, params["W4"], params["b4"], 2)
    x5 = conv(emb, params["W5"], params["b5"], 2)
    feat = jnp.concatenate([x3.max(-1), x4.max(-1), x5.max(-1)], axis=1)
    return feat @ params["Wf"].T + params["bf"]


if __name__ == "__main__":
    key = jax.random.PRNGKey(0)
    pkey, xkey, ykey = jax.random.split(key, 3)
    params = init_params(pkey)

    B, L = 2, 16
    x_tokens = jax.random.randint(xkey, (B, L), 0, VOCAB, dtype=jnp.int32)
    y_labels = jax.random.randint(ykey, (B,), 0, CLASSES, dtype=jnp.int32)

    # eval path (logits) + cross-check against pure-JAX reference
    logits = jax.block_until_ready(cnn_forward(x_tokens, y_labels, params, mode="eval"))
    ref = jax.block_until_ready(ref_main_task(x_tokens, params))
    np.testing.assert_allclose(np.asarray(logits), np.asarray(ref), atol=2e-4, rtol=2e-4)

    # train path (CrossEntropyLoss, mean reduction)
    loss = jax.block_until_ready(cnn_forward(x_tokens, y_labels, params, mode="train"))
    assert loss.shape == () and jnp.isfinite(loss)

    print("KERNEL_OK")
</pallas_src>

<mosaic_0001>
module attributes {stable_mosaic.version = 11 : i64} {
  func.func @kernel(%arg0: i32, %arg1: memref<2x16x64xf32, #tpu.memory_space<vmem>>, %arg2: memref<321x128xf32, #tpu.memory_space<vmem>>, %arg3: memref<129x2xf32, #tpu.memory_space<vmem>>, %arg4: memref<2x2xf32, #tpu.memory_space<vmem>>, %arg5: memref<52x64xf32, #tpu.memory_space<vmem>>) attributes {dimension_semantics = [#tpu.dimension_semantics<parallel>], iteration_bounds = array<i64: 1>, scalar_prefetch = 0 : i64, scratch_operands = 1 : i64, tpu.core_type = #tpu.core_type<tc>, window_params = [{transform_indices = @transform_0, window_bounds = array<i64: 2, 16, 64>}, {pipeline_mode = #tpu.pipeline_mode<synchronous>, transform_indices = @transform_1, window_bounds = array<i64: 321, 128>}, {pipeline_mode = #tpu.pipeline_mode<synchronous>, transform_indices = @transform_2, window_bounds = array<i64: 129, 2>}, {transform_indices = @transform_3, window_bounds = array<i64: 2, 2>}]} {
    %cst = arith.constant 0.000000e+00 : f32
    %0 = vector.broadcast %cst : f32 to vector<2x64xf32>
    %cst_0 = arith.constant 0.000000e+00 : f32
    %1 = vector.broadcast %cst_0 : f32 to vector<6x64xf32>
    %c0 = arith.constant 0 : index
    %c0_1 = arith.constant 0 : index
    %2 = vector.load %arg5[%c0, %c0_1] : memref<52x64xf32, #tpu.memory_space<vmem>>, vector<2x64xf32>
    tpu.vector_store %arg5[%c0, %c0_1], %0 {strides = array<i32>} : memref<52x64xf32, #tpu.memory_space<vmem>>, vector<2x64xf32>,
    %c0_2 = arith.constant 0 : index
    %c0_3 = arith.constant 0 : index
    %c0_4 = arith.constant 0 : index
    %3 = vector.load %arg1[%c0_2, %c0_3, %c0_4] : memref<2x16x64xf32, #tpu.memory_space<vmem>>, vector<1x16x64xf32>
    %4 = vector.shape_cast %3 : vector<1x16x64xf32> to vector<16x64xf32>
    %c2 = arith.constant 2 : index
    %c0_5 = arith.constant 0 : index
    %5 = vector.load %arg5[%c2, %c0_5] : memref<52x64xf32, #tpu.memory_space<vmem>>, vector<16x64xf32>
    tpu.vector_store %arg5[%c2, %c0_5], %4 {strides = array<i32>} : memref<52x64xf32, #tpu.memory_space<vmem>>, vector<16x64xf32>,
    %c18 = arith.constant 18 : index
    %c0_6 = arith.constant 0 : index
    %6 = vector.load %arg5[%c18, %c0_6] : memref<52x64xf32, #tpu.memory_space<vmem>>, vector<6x64xf32>
    tpu.vector_store %arg5[%c18, %c0_6], %1 {strides = array<i32>} : memref<52x64xf32, #tpu.memory_space<vmem>>, vector<6x64xf32>,
    %c24 = arith.constant 24 : index
    %c0_7 = arith.constant 0 : index
    %7 = vector.load %arg5[%c24, %c0_7] : memref<52x64xf32, #tpu.memory_space<vmem>>, vector<2x64xf32>
    tpu.vector_store %arg5[%c24, %c0_7], %0 {strides = array<i32>} : memref<52x64xf32, #tpu.memory_space<vmem>>, vector<2x64xf32>,
    %c1 = arith.constant 1 : index
    %c0_8 = arith.constant 0 : index
    %c0_9 = arith.constant 0 : index
    %8 = vector.load %arg1[%c1, %c0_8, %c0_9] : memref<2x16x64xf32, #tpu.memory_space<vmem>>, vector<1x16x64xf32>
    %9 = vector.shape_cast %8 : vector<1x16x64xf32> to vector<16x64xf32>
    %c26 = arith.constant 26 : index
    %c0_10 = arith.constant 0 : index
    %10 = vector.load %arg5[%c26, %c0_10] : memref<52x64xf32, #tpu.memory_space<vmem>>, vector<16x64xf32>
    tpu.vector_store %arg5[%c26, %c0_10], %9 {strides = array<i32>} : memref<52x64xf32, #tpu.memory_space<vmem>>, vector<16x64xf32>,
    %c42 = arith.constant 42 : index
    %c0_11 = arith.constant 0 : index
    %11 = vector.load %arg5[%c42, %c0_11] : memref<52x64xf32, #tpu.memory_space<vmem>>, vector<6x64xf32>
    tpu.vector_store %arg5[%c42, %c0_11], %1 {strides = array<i32>} : memref<52x64xf32, #tpu.memory_space<vmem>>, vector<6x64xf32>,
    %cst_12 = arith.constant 0.000000e+00 : f32
    %12 = vector.broadcast %cst_12 : f32 to vector<4x64xf32>
    %c48 = arith.constant 48 : index
    %c0_13 = arith.constant 0 : index
    %13 = vector.load %arg5[%c48, %c0_13] : memref<52x64xf32, #tpu.memory_space<vmem>>, vector<4x64xf32>
    tpu.vector_store %arg5[%c48, %c0_13], %12 {strides = array<i32>} : memref<52x64xf32, #tpu.memory_space<vmem>>, vector<4x64xf32>,
    %c0_14 = arith.constant 0 : index
    %c0_15 = arith.constant 0 : index
    %14 = vector.load %arg5[%c0_14, %c0_15] : memref<52x64xf32, #tpu.memory_space<vmem>>, vector<48x64xf32>
    %c0_16 = arith.constant 0 : index
    %c0_17 = arith.constant 0 : index
    %15 = vector.load %arg2[%c0_16, %c0_17] : memref<321x128xf32, #tpu.memory_space<vmem>>, vector<64x128xf32>
    %cst_18 = arith.constant dense<0.000000e+00> : vector<48x128xf32>
    %16 = tpu.matmul %14, %15, %cst_18 {dimension_numbers = #tpu.dot_dimension_numbers<[1], [0], [0], [1], [0, 0, 1, 1], [], []>} : vector<48x64xf32>, vector<64x128xf32>, vector<48x128xf32> -> vector<48x128xf32>
    %c1_19 = arith.constant 1 : index
    %c0_20 = arith.constant 0 : index
    %17 = vector.load %arg5[%c1_19, %c0_20] : memref<52x64xf32, #tpu.memory_space<vmem>>, vector<48x64xf32>
    %c64 = arith.constant 64 : index
    %c0_21 = arith.constant 0 : index
    %18 = vector.load %arg2[%c64, %c0_21] : memref<321x128xf32, #tpu.memory_space<vmem>>, vector<64x128xf32>
    %cst_22 = arith.constant dense<0.000000e+00> : vector<48x128xf32>
    %19 = tpu.matmul %17, %18, %cst_22 {dimension_numbers = #tpu.dot_dimension_numbers<[1], [0], [0], [1], [0, 0, 1, 1], [], []>} : vector<48x64xf32>, vector<64x128xf32>, vector<48x128xf32> -> vector<48x128xf32>
    %20 = arith.addf %16, %19 : vector<48x128xf32>
    %c2_23 = arith.constant 2 : index
    %c0_24 = arith.constant 0 : index
    %21 = vector.load %arg5[%c2_23, %c0_24] : memref<52x64xf32, #tpu.memory_space<vmem>>, vector<48x64xf32>
    %c128 = arith.constant 128 : index
    %c0_25 = arith.constant 0 : index
    %22 = vector.load %arg2[%c128, %c0_25] : memref<321x128xf32, #tpu.memory_space<vmem>>, vector<64x128xf32>
    %cst_26 = arith.constant dense<0.000000e+00> : vector<48x128xf32>
    %23 = tpu.matmul %21, %22, %cst_26 {dimension_numbers = #tpu.dot_dimension_numbers<[1], [0], [0], [1], [0, 0, 1, 1], [], []>} : vector<48x64xf32>, vector<64x128xf32>, vector<48x128xf32> -> vector<48x128xf32>
    %24 = arith.addf %20, %23 : vector<48x128xf32>
    %c3 = arith.constant 3 : index
    %c0_27 = arith.constant 0 : index
    %25 = vector.load %arg5[%c3, %c0_27] : memref<52x64xf32, #tpu.memory_space<vmem>>, vector<48x64xf32>
    %c192 = arith.constant 192 : index
    %c0_28 = arith.constant 0 : index
    %26 = vector.load %arg2[%c192, %c0_28] : memref<321x128xf32, #tpu.memory_space<vmem>>, vector<64x128xf32>
    %cst_29 = arith.constant dense<0.000000e+00> : vector<48x128xf32>
    %27 = tpu.matmul %25, %26, %cst_29 {dimension_numbers = #tpu.dot_dimension_numbers<[1], [0], [0], [1], [0, 0, 1, 1], [], []>} : vector<48x64xf32>, vector<64x128xf32>, vector<48x128xf32> -> vector<48x128xf32>
    %28 = arith.addf %24, %27 : vector<48x128xf32>
    %c4 = arith.constant 4 : index
    %c0_30 = arith.constant 0 : index
    %29 = vector.load %arg5[%c4, %c0_30] : memref<52x64xf32, #tpu.memory_space<vmem>>, vector<48x64xf32>
    %c256 = arith.constant 256 : index
    %c0_31 = arith.constant 0 : index
    %30 = vector.load %arg2[%c256, %c0_31] : memref<321x128xf32, #tpu.memory_space<vmem>>, vector<64x128xf32>
    %cst_32 = arith.constant dense<0.000000e+00> : vector<48x128xf32>
    %31 = tpu.matmul %29, %30, %cst_32 {dimension_numbers = #tpu.dot_dimension_numbers<[1], [0], [0], [1], [0, 0, 1, 1], [], []>} : vector<48x64xf32>, vector<64x128xf32>, vector<48x128xf32> -> vector<48x128xf32>
    %32 = arith.addf %28, %31 : vector<48x128xf32>
    %c320 = arith.constant 320 : index
    %c0_33 = arith.constant 0 : index
    %33 = vector.load %arg2[%c320, %c0_33] : memref<321x128xf32, #tpu.memory_space<vmem>>, vector<1x128xf32>
    %34 = vector.broadcast %33 : vector<1x128xf32> to vector<48x128xf32>
    %35 = arith.addf %32, %34 : vector<48x128xf32>
    %cst_34 = arith.constant 0.000000e+00 : f32
    %36 = vector.broadcast %cst_34 : f32 to vector<48x128xf32>
    %37 = arith.maximumf %35, %36 : vector<48x128xf32>
    %38 = tpu.iota {dimensions = array<i32: 1>} : vector<1x128xi32>
    %c10_i32 = arith.constant 10 : i32
    %39 = vector.broadcast %c10_i32 : i32 to vector<1x128xi32>
    %40 = arith.cmpi sge, %38, %39 : vector<1x128xi32>
    %c20_i32 = arith.constant 20 : i32
    %41 = vector.broadcast %c20_i32 : i32 to vector<1x128xi32>
    %42 = arith.cmpi slt, %38, %41 : vector<1x128xi32>
    %43 = arith.andi %40, %42 : vector<1x128xi1>
    %44 = vector.extract_strided_slice %37 {offsets = [0, 0], sizes = [16, 128], strides = [1, 1]} : vector<48x128xf32> to vector<16x128xf32>
    %cst_35 = arith.constant dense<0xFF800000> : vector<128xf32>
    %45 = vector.multi_reduction <maximumf>, %44, %cst_35 [0] : vector<16x128xf32> to vector<128xf32>
    %46 = vector.shape_cast %45 : vector<128xf32> to vector<1x128xf32>
    %47 = vector.extract_strided_slice %37 {offsets = [16, 0], sizes = [1, 128], strides = [1, 1]} : vector<48x128xf32> to vector<1x128xf32>
    %cst_36 = arith.constant 0.000000e+00 : f32
    %48 = vector.broadcast %cst_36 : f32 to vector<1x128xf32>
    %49 = arith.select %43, %47, %48 : vector<1x128xi1>, vector<1x128xf32>
    %50 = arith.maximumf %46, %49 : vector<1x128xf32>
    %51 = vector.extract_strided_slice %37 {offsets = [24, 0], sizes = [16, 128], strides = [1, 1]} : vector<48x128xf32> to vector<16x128xf32>
    %cst_37 = arith.constant dense<0xFF800000> : vector<128xf32>
    %52 = vector.multi_reduction <maximumf>, %51, %cst_37 [0] : vector<16x128xf32> to vector<128xf32>
    %53 = vector.shape_cast %52 : vector<128xf32> to vector<1x128xf32>
    %54 = vector.extract_strided_slice %37 {offsets = [40, 0], sizes = [1, 128], strides = [1, 1]} : vector<48x128xf32> to vector<1x128xf32>
    %cst_38 = arith.constant 0.000000e+00 : f32
    %55 = vector.broadcast %cst_38 : f32 to vector<1x128xf32>
    %56 = arith.select %43, %54, %55 : vector<1x128xi1>, vector<1x128xf32>
    %57 = arith.maximumf %53, %56 : vector<1x128xf32>
    %58 = tpu.concatenate %50, %57 in 0 : vector<1x128xf32>, vector<1x128xf32> -> vector<2x128xf32>
    %c0_39 = arith.constant 0 : index
    %c0_40 = arith.constant 0 : index
    %59 = vector.load %arg3[%c0_39, %c0_40] : memref<129x2xf32, #tpu.memory_space<vmem>>, vector<128x2xf32>
    %cst_41 = arith.constant dense<0.000000e+00> : vector<2x2xf32>
    %60 = tpu.matmul %58, %59, %cst_41 {dimension_numbers = #tpu.dot_dimension_numbers<[1], [0], [0], [1], [0, 0, 1, 1], [], []>} : vector<2x128xf32>, vector<128x2xf32>, vector<2x2xf32> -> vector<2x2xf32>
    %c128_42 = arith.constant 128 : index
    %c0_43 = arith.constant 0 : index
    %61 = vector.load %arg3[%c128_42, %c0_43] : memref<129x2xf32, #tpu.memory_space<vmem>>, vector<1x2xf32>
    %62 = vector.broadcast %61 : vector<1x2xf32> to vector<2x2xf32>
    %63 = arith.addf %60, %62 : vector<2x2xf32>
    %c0_44 = arith.constant 0 : index
    %c0_45 = arith.constant 0 : index
    %64 = vector.load %arg4[%c0_44, %c0_45] : memref<2x2xf32, #tpu.memory_space<vmem>>, vector<2x2xf32>
    tpu.vector_store %arg4[%c0_44, %c0_45], %63 {strides = array<i32>} : memref<2x2xf32, #tpu.memory_space<vmem>>, vector<2x2xf32>,
    return
  }
  func.func @transform_0(%arg0: i32) -> (i32, i32, i32) {
    %c0_i32 = arith.constant 0 : i32
    %c0_i32_0 = arith.constant 0 : i32
    %c0_i32_1 = arith.constant 0 : i32
    return %arg0, %c0_i32, %c0_i32_0 : i32, i32, i32
  }
  func.func @transform_1(%arg0: i32) -> (i32, i32) {
    %c0_i32 = arith.constant 0 : i32
    %c0_i32_0 = arith.constant 0 : i32
    %c0_i32_1 = arith.constant 0 : i32
    return %c0_i32, %c0_i32_0 : i32, i32
  }
  func.func @transform_2(%arg0: i32) -> (i32, i32) {
    %c0_i32 = arith.constant 0 : i32
    %c0_i32_0 = arith.constant 0 : i32
    %c0_i32_1 = arith.constant 0 : i32
    return %c0_i32, %c0_i32_0 : i32, i32
  }
  func.func @transform_3(%arg0: i32) -> (i32, i32) {
    %c0_i32 = arith.constant 0 : i32
    %c0_i32_0 = arith.constant 0 : i32
    return %arg0, %c0_i32 : i32, i32
  }
}

</mosaic_0001>

<llo_original>
// kernel: tpu_custom_call.1
$region0: #{tpu_custom_call.1}
  #allocation0 [shape = 'u32[]', space=smem, size = 0x4, offset = 0x4, fixed_abs, tag = 'smem constant byte address 0x4 - core index']
  #allocation1 [shape = 'u32[144,128]{1,0:T(1,128)}', space=vmem, size = 0x12000, scoped, tag = 'internal scratch']
  #allocation2 [shape = 'f32[52,64]{1,0:T(8,128)}', space=vmem, size = 0x7000, scoped, tag = 'scratch operand']
  %s0 = inlined_call_operand.vmem [shape: f32[2,16,64], index: 0, kind: input, shape index: {}]
  %s1 = inlined_call_operand.hbm [shape: f32[321,128], index: 1, kind: input, shape index: {}]
  %s2 = inlined_call_operand.vmem [shape: f32[129,2], index: 2, kind: input, shape index: {}]
  %s3 = inlined_call_operand.hbm [shape: f32[2,2], index: 3, kind: output, shape index: {}]
  %s4 = sld [smem:[#allocation0]]
  $region26: #{tpu_custom_call.1} parent=0
    _
  %s6 = ssub.s32 1, %s4
  %s7 = scalar_select 0, %s6, %s4
  $region1: #{tpu_custom_call.1} parent=0
    #allocation3 [shape = 'u8[167936]{0}', space=vmem, size = 0x29000, scoped, tag = 'input window, operand 1, single buffered']
    #allocation4 [shape = 's32[1]{0}', space=sflag, size = 0x4, scoped, tag = 'scoped memory for tpu_custom_call.1']
    #allocation5 [shape = 's32[1]{0}', space=sflag, size = 0x4, scoped, tag = 'scoped memory for tpu_custom_call.1']
    #allocation6 [shape = 'u8[1024]{0}', space=vmem, size = 0x400, scoped, tag = 'output window, operand 0, single buffered']
    %8 = vsyncpa [#allocation4], 0
    %9 = vsyncpa [#allocation5], 0
    // Predicated region
    $region2: #{tpu_custom_call.1} parent=1 // pred_check
      _
    $region3: #{tpu_custom_call.1} parent=1 // pred_check_branch
      %11 = sbr.rel (0) target = $region5
    $region4: #{tpu_custom_call.1} parent=1 // pred_region
      _
    $region5: #{tpu_custom_call.1} parent=1 // pred_fallthru
      _
    // Predicated region
    $region6: #{tpu_custom_call.1} parent=1 // pred_check
      _
    $region7: #{tpu_custom_call.1} parent=1 // pred_check_branch
      %13 = sbr.rel (0) target = $region9
    $region8: #{tpu_custom_call.1} parent=1 // pred_region
      %s15 = ssub.s32 5248, 5248
      %16 = vsyncadd [#allocation4], %s15
      %s17 = sshll.u32 [#allocation3], 4
      %s18 = int_to_ptr.vmem [resolvable:$true] %s17
      %23 = dma.hbm_to_vmem [thread:$0]  %s1, 5248, %s18, [#allocation4], 128, 128, 8
    $region9: #{tpu_custom_call.1} parent=1 // pred_fallthru
      _
    // Predicated region
    $region10: #{tpu_custom_call.1} parent=1 // pred_check
      _
    $region11: #{tpu_custom_call.1} parent=1 // pred_check_branch
      %25 = sbr.rel (0) target = $region13
    $region12: #{tpu_custom_call.1} parent=1 // pred_region
      _
    $region13: #{tpu_custom_call.1} parent=1 // pred_fallthru
      _
    // Predicated region
    $region14: #{tpu_custom_call.1} parent=1 // pred_check
      _
    $region15: #{tpu_custom_call.1} parent=1 // pred_check_branch
      %27 = sbr.rel (0) target = $region17
    $region16: #{tpu_custom_call.1} parent=1 // pred_region
      %28 = dma.done [#allocation4], 5248
    $region17: #{tpu_custom_call.1} parent=1 // pred_fallthru
      _
    %vm29 = vcmask 517120
    %30 = vst.msk [vmem:[#allocation2] sm:$0x3] %vm29, 0.0
    %v31 = vld [vmem:[%s0] sm:$0xff]
    %v32 = vld [vmem:[%s0 + $0x8] sm:$0xff]
    %vm33 = vcmask 523264
    %34 = vst.msk [vmem:[#allocation2 + $0x2] sm:$0xff] %vm33, %v31
    %35 = vst.msk [vmem:[#allocation2 + $0xa] sm:$0xff] %vm33, %v32
    %vm36 = vcmask 521216
    %37 = vst.msk [vmem:[#allocation2 + $0x12] sm:$0x3f] %vm36, 0.0
    %38 = vst.msk [vmem:[#allocation2 + $0x18] sm:$0x3] %vm29, 0.0
    %s39 = scalar_lea.vmem %s0, 16
    %v40 = vld [vmem:[%s39] sm:$0xff]
    %v41 = vld [vmem:[%s39 + $0x8] sm:$0xff]
    %42 = vst.msk [vmem:[#allocation2 + $0x1a] sm:$0xff] %vm33, %v40
    %43 = vst.msk [vmem:[#allocation2 + $0x22] sm:$0xff] %vm33, %v41
    %44 = vst.msk [vmem:[#allocation2 + $0x2a] sm:$0x3f] %vm36, 0.0
    %vm45 = vcmask 519168
    %46 = vst.msk [vmem:[#allocation2 + $0x30] sm:$0xf] %vm45, 0.0
    %v47 = vld [vmem:[#allocation2] sm:$0xff]
    %v48 = vld [vmem:[#allocation2 + $0x8] sm:$0xff]
    %v49 = vld [vmem:[#allocation2 + $0x10] sm:$0xff]
    %v50 = vld [vmem:[#allocation2 + $0x18] sm:$0xff]
    %v51 = vld [vmem:[#allocation2 + $0x20] sm:$0xff]
    %v52 = vld [vmem:[#allocation2 + $0x28] sm:$0xff]
    %v53 = vld [vmem:[#allocation3] sm:$0xff]
    %v54 = vld [vmem:[#allocation3 + $0x8] sm:$0xff]
    %v55 = vld [vmem:[#allocation3 + $0x10] sm:$0xff]
    %v56 = vld [vmem:[#allocation3 + $0x18] sm:$0xff]
    %v57 = vld [vmem:[#allocation3 + $0x20] sm:$0xff]
    %v58 = vld [vmem:[#allocation3 + $0x28] sm:$0xff]
    %v59 = vld [vmem:[#allocation3 + $0x30] sm:$0xff]
    %v60 = vld [vmem:[#allocation3 + $0x38] sm:$0xff]
    %v61 = vld [vmem:[#allocation2 + $0x1] sm:$0xff]
    %v62 = vld [vmem:[#allocation2 + $0x9] sm:$0xff]
    %v63 = vld [vmem:[#allocation2 + $0x11] sm:$0xff]
    %v64 = vld [vmem:[#allocation2 + $0x19] sm:$0xff]
    %v65 = vld [vmem:[#allocation2 + $0x21] sm:$0xff]
    %v66 = vld [vmem:[#allocation2 + $0x29] sm:$0xff]
    %v67 = vld [vmem:[#allocation3 + $0x40] sm:$0xff]
    %v68 = vld [vmem:[#allocation3 + $0x48] sm:$0xff]
    %v69 = vld [vmem:[#allocation3 + $0x50] sm:$0xff]
    %v70 = vld [vmem:[#allocation3 + $0x58] sm:$0xff]
    %v71 = vld [vmem:[#allocation3 + $0x60] sm:$0xff]
    %v72 = vld [vmem:[#allocation3 + $0x68] sm:$0xff]
    %v73 = vld [vmem:[#allocation3 + $0x70] sm:$0xff]
    %v74 = vld [vmem:[#allocation3 + $0x78] sm:$0xff]
    %v76 = vsel %vm33, %v61, 0
    %v79 = vsel %vm33, %v62, 0
    %v82 = vsel %vm33, %v63, 0
    %v85 = vsel %vm33, %v64, 0
    %v88 = vsel %vm33, %v65, 0
    %v91 = vsel %vm33, %v66, 0
    %93 = vmatprep.subr.mxu0 0.0
    %94 = vmatpush1.msra.mxu0 0.0
    %95 = vmatprep.subr.mxu0 0.0
    %96 = vmatpush1.msra.mxu0 0.0
    %97 = vmatprep.subr.mxu0 0.0
    %98 = vmatpush1.msra.mxu0 0.0
    %99 = vmatprep.subr.mxu0 0.0
    %100 = vmatpush1.msra.mxu0 0.0
    %101 = vmatprep.subr.mxu0 0.0
    %102 = vmatpush1.msra.mxu0 0.0
    %103 = vmatprep.subr.mxu0 0.0
    %104 = vmatpush1.msra.mxu0 0.0
    %105 = vmatprep.subr.mxu0 0.0
    %106 = vmatpush1.msra.mxu0 0.0
    %107 = vmatprep.subr.mxu0 0.0
    %108 = vmatpush1.msra.mxu0 0.0
    %109 = vmatprep.subr.mxu0 0.0
    %110 = vmatpush1.msra.mxu0 %v74
    %111 = vmatprep.subr.mxu0 0.0
    %112 = vmatpush1.msra.mxu0 %v73
    %113 = vmatprep.subr.mxu0 0.0
    %114 = vmatpush1.msra.mxu0 %v72
    %115 = vmatprep.subr.mxu0 0.0
    %116 = vmatpush1.msra.mxu0 %v71
    %117 = vmatprep.subr.mxu0 0.0
    %118 = vmatpush1.msra.mxu0 %v70
    %119 = vmatprep.subr.mxu0 0.0
    %120 = vmatpush1.msra.mxu0 %v69
    %121 = vmatprep.subr.mxu0 0.0
    %122 = vmatpush1.msra.mxu0 %v68
    %123 = vmatprep.subr.mxu0 0.0
    %124 = vmatpush1.msra.mxu0 %v67
    %125 = vmatprep.subr.mxu0 0.0
    %126 = vmatpush2.msra.mxu0 0.0
    %127 = vmatprep.subr.mxu0 0.0
    %128 = vmatpush2.msra.mxu0 0.0
    %129 = vmatprep.subr.mxu0 0.0
    %130 = vmatpush2.msra.mxu0 0.0
    %131 = vmatprep.subr.mxu0 0.0
    %132 = vmatpush2.msra.mxu0 0.0
    %133 = vmatprep.subr.mxu0 0.0
    %134 = vmatpush2.msra.mxu0 0.0
    %135 = vmatprep.subr.mxu0 0.0
    %136 = vmatpush2.msra.mxu0 0.0
    %137 = vmatprep.subr.mxu0 0.0
    %138 = vmatpush2.msra.mxu0 0.0
    %139 = vmatprep.subr.mxu0 0.0
    %140 = vmatpush2.msra.mxu0 0.0
    %141 = vmatprep.subr.mxu0 0.0
    %142 = vmatpush2.msra.mxu0 0.0
    %143 = vmatprep.subr.mxu0 0.0
    %144 = vmatpush2.msra.mxu0 0.0
    %145 = vmatprep.subr.mxu0 0.0
    %146 = vmatpush2.msra.mxu0 0.0
    %147 = vmatprep.subr.mxu0 0.0
    %148 = vmatpush2.msra.mxu0 0.0
    %149 = vmatprep.subr.mxu0 0.0
    %150 = vmatpush2.msra.mxu0 0.0
    %151 = vmatprep.subr.mxu0 0.0
    %152 = vmatpush2.msra.mxu0 0.0
    %153 = vmatprep.subr.mxu0 0.0
    %154 = vmatpush2.msra.mxu0 0.0
    %155 = vmatprep.subr.mxu0 0.0
    %156 = vmatpush2.msra.mxu0 0.0
    %157 = vmatprep.mubr.f32.mxu0 0.0
    %158 = vmatmul.mubr.f32.gmra.mxu0 %v76
    %v159 = vpop.f32.mrf.mxu0
    %v160 = vadd.f32 0.0, %v159
    %v161 = vpop.f32.mrf.mxu0
    %162 = vmatprep.mubr.f32.mxu0 0.0
    %163 = vmatmul.mubr.f32.gmra.mxu0 %v79
    %v164 = vpop.f32.mrf.mxu0
    %v165 = vadd.f32 0.0, %v164
    %v166 = vpop.f32.mrf.mxu0
    %167 = vmatprep.mubr.f32.mxu0 0.0
    %168 = vmatmul.mubr.f32.gmra.mxu0 %v82
    %v169 = vpop.f32.mrf.mxu0
    %v170 = vadd.f32 0.0, %v169
    %v171 = vpop.f32.mrf.mxu0
    %172 = vmatprep.mubr.f32.mxu0 0.0
    %173 = vmatmul.mubr.f32.gmra.mxu0 %v85
    %v174 = vpop.f32.mrf.mxu0
    %v175 = vadd.f32 0.0, %v174
    %v176 = vpop.f32.mrf.mxu0
    %177 = vmatprep.mubr.f32.mxu0 0.0
    %178 = vmatmul.mubr.f32.gmra.mxu0 %v88
    %v179 = vpop.f32.mrf.mxu0
    %v180 = vadd.f32 0.0, %v179
    %v181 = vpop.f32.mrf.mxu0
    %182 = vmatprep.mubr.f32.mxu0 0.0
    %183 = vmatmul.mubr.f32.gmra.mxu0 %v91
    %v184 = vpop.f32.mrf.mxu0
    %v185 = vadd.f32 0.0, %v184
    %v186 = vpop.f32.mrf.mxu0
    %187 = vdwg.mxu0
    %v189 = vsel %vm33, %v47, 0
    %v192 = vsel %vm33, %v48, 0
    %v195 = vsel %vm33, %v49, 0
    %v198 = vsel %vm33, %v50, 0
    %v201 = vsel %vm33, %v51, 0
    %v204 = vsel %vm33, %v52, 0
    %206 = vmatprep.subr.mxu0 0.0
    %207 = vmatpush1.msra.mxu0 0.0
    %208 = vmatprep.subr.mxu0 0.0
    %209 = vmatpush1.msra.mxu0 0.0
    %210 = vmatprep.subr.mxu0 0.0
    %211 = vmatpush1.msra.mxu0 0.0
    %212 = vmatprep.subr.mxu0 0.0
    %213 = vmatpush1.msra.mxu0 0.0
    %214 = vmatprep.subr.mxu0 0.0
    %215 = vmatpush1.msra.mxu0 0.0
    %216 = vmatprep.subr.mxu0 0.0
    %217 = vmatpush1.msra.mxu0 0.0
    %218 = vmatprep.subr.mxu0 0.0
    %219 = vmatpush1.msra.mxu0 0.0
    %220 = vmatprep.subr.mxu0 0.0
    %221 = vmatpush1.msra.mxu0 0.0
    %222 = vmatprep.subr.mxu0 0.0
    %223 = vmatpush1.msra.mxu0 %v60
    %224 = vmatprep.subr.mxu0 0.0
    %225 = vmatpush1.msra.mxu0 %v59
    %226 = vmatprep.subr.mxu0 0.0
    %227 = vmatpush1.msra.mxu0 %v58
    %228 = vmatprep.subr.mxu0 0.0
    %229 = vmatpush1.msra.mxu0 %v57
    %230 = vmatprep.subr.mxu0 0.0
    %231 = vmatpush1.msra.mxu0 %v56
    %232 = vmatprep.subr.mxu0 0.0
    %233 = vmatpush1.msra.mxu0 %v55
    %234 = vmatprep.subr.mxu0 0.0
    %235 = vmatpush1.msra.mxu0 %v54
    %236 = vmatprep.subr.mxu0 0.0
    %237 = vmatpush1.msra.mxu0 %v53
    %238 = vmatprep.subr.mxu0 0.0
    %239 = vmatpush2.msra.mxu0 0.0
    %240 = vmatprep.subr.mxu0 0.0
    %241 = vmatpush2.msra.mxu0 0.0
    %242 = vmatprep.subr.mxu0 0.0
    %243 = vmatpush2.msra.mxu0 0.0
    %244 = vmatprep.subr.mxu0 0.0
    %245 = vmatpush2.msra.mxu0 0.0
    %246 = vmatprep.subr.mxu0 0.0
    %247 = vmatpush2.msra.mxu0 0.0
    %248 = vmatprep.subr.mxu0 0.0
    %249 = vmatpush2.msra.mxu0 0.0
    %250 = vmatprep.subr.mxu0 0.0
    %251 = vmatpush2.msra.mxu0 0.0
    %252 = vmatprep.subr.mxu0 0.0
    %253 = vmatpush2.msra.mxu0 0.0
    %254 = vmatprep.subr.mxu0 0.0
    %255 = vmatpush2.msra.mxu0 0.0
    %256 = vmatprep.subr.mxu0 0.0
    %257 = vmatpush2.msra.mxu0 0.0
    %258 = vmatprep.subr.mxu0 0.0
    %259 = vmatpush2.msra.mxu0 0.0
    %260 = vmatprep.subr.mxu0 0.0
    %261 = vmatpush2.msra.mxu0 0.0
    %262 = vmatprep.subr.mxu0 0.0
    %263 = vmatpush2.msra.mxu0 0.0
    %264 = vmatprep.subr.mxu0 0.0
    %265 = vmatpush2.msra.mxu0 0.0
    %266 = vmatprep.subr.mxu0 0.0
    %267 = vmatpush2.msra.mxu0 0.0
    %268 = vmatprep.subr.mxu0 0.0
    %269 = vmatpush2.msra.mxu0 0.0
    %270 = vmatprep.mubr.f32.mxu0 0.0
    %271 = vmatmul.mubr.f32.gmra.mxu0 %v189
    %v272 = vpop.f32.mrf.mxu0
    %v273 = vadd.f32 %v160, %v272
    %v274 = vpop.f32.mrf.mxu0
    %275 = vmatprep.mubr.f32.mxu0 0.0
    %276 = vmatmul.mubr.f32.gmra.mxu0 %v192
    %v277 = vpop.f32.mrf.mxu0
    %v278 = vadd.f32 %v165, %v277
    %v279 = vpop.f32.mrf.mxu0
    %280 = vmatprep.mubr.f32.mxu0 0.0
    %281 = vmatmul.mubr.f32.gmra.mxu0 %v195
    %v282 = vpop.f32.mrf.mxu0
    %v283 = vadd.f32 %v170, %v282
    %v284 = vpop.f32.mrf.mxu0
    %285 = vmatprep.mubr.f32.mxu0 0.0
    %286 = vmatmul.mubr.f32.gmra.mxu0 %v198
    %v287 = vpop.f32.mrf.mxu0
    %v288 = vadd.f32 %v175, %v287
    %v289 = vpop.f32.mrf.mxu0
    %290 = vmatprep.mubr.f32.mxu0 0.0
    %291 = vmatmul.mubr.f32.gmra.mxu0 %v201
    %v292 = vpop.f32.mrf.mxu0
    %v293 = vadd.f32 %v180, %v292
    %v294 = vpop.f32.mrf.mxu0
    %295 = vmatprep.mubr.f32.mxu0 0.0
    %296 = vmatmul.mubr.f32.gmra.mxu0 %v204
    %v297 = vpop.f32.mrf.mxu0
    %v298 = vadd.f32 %v185, %v297
    %v299 = vpop.f32.mrf.mxu0
    %300 = vdwg.mxu0
    %v301 = vld [vmem:[#allocation2 + $0x2] sm:$0xff]
    %v302 = vld [vmem:[#allocation2 + $0xa] sm:$0xff]
    %v303 = vld [vmem:[#allocation2 + $0x12] sm:$0xff]
    %v304 = vld [vmem:[#allocation2 + $0x1a] sm:$0xff]
    %v305 = vld [vmem:[#allocation2 + $0x22] sm:$0xff]
    %v306 = vld [vmem:[#allocation2 + $0x2a] sm:$0xff]
    %v307 = vld [vmem:[#allocation3 + $0x80] sm:$0xff]
    %v308 = vld [vmem:[#allocation3 + $0x88] sm:$0xff]
    %v309 = vld [vmem:[#allocation3 + $0x90] sm:$0xff]
    %v310 = vld [vmem:[#allocation3 + $0x98] sm:$0xff]
    %v311 = vld [vmem:[#allocation3 + $0xa0] sm:$0xff]
    %v312 = vld [vmem:[#allocation3 + $0xa8] sm:$0xff]
    %v313 = vld [vmem:[#allocation3 + $0xb0] sm:$0xff]
    %v314 = vld [vmem:[#allocation3 + $0xb8] sm:$0xff]
    %v316 = vsel %vm33, %v301, 0
    %v319 = vsel %vm33, %v302, 0
    %v322 = vsel %vm33, %v303, 0
    %v325 = vsel %vm33, %v304, 0
    %v328 = vsel %vm33, %v305, 0
    %v331 = vsel %vm33, %v306, 0
    %333 = vmatprep.subr.mxu0 0.0
    %334 = vmatpush1.msra.mxu0 0.0
    %335 = vmatprep.subr.mxu0 0.0
    %336 = vmatpush1.msra.mxu0 0.0
    %337 = vmatprep.subr.mxu0 0.0
    %338 = vmatpush1.msra.mxu0 0.0
    %339 = vmatprep.subr.mxu0 0.0
    %340 = vmatpush1.msra.mxu0 0.0
    %341 = vmatprep.subr.mxu0 0.0
    %342 = vmatpush1.msra.mxu0 0.0
    %343 = vmatprep.subr.mxu0 0.0
    %344 = vmatpush1.msra.mxu0 0.0
    %345 = vmatprep.subr.mxu0 0.0
    %346 = vmatpush1.msra.mxu0 0.0
    %347 = vmatprep.subr.mxu0 0.0
    %348 = vmatpush1.msra.mxu0 0.0
    %349 = vmatprep.subr.mxu0 0.0
    %350 = vmatpush1.msra.mxu0 %v314
    %351 = vmatprep.subr.mxu0 0.0
    %352 = vmatpush1.msra.mxu0 %v313
    %353 = vmatprep.subr.mxu0 0.0
    %354 = vmatpush1.msra.mxu0 %v312
    %355 = vmatprep.subr.mxu0 0.0
    %356 = vmatpush1.msra.mxu0 %v311
    %357 = vmatprep.subr.mxu0 0.0
    %358 = vmatpush1.msra.mxu0 %v310
    %359 = vmatprep.subr.mxu0 0.0
    %360 = vmatpush1.msra.mxu0 %v309
    %361 = vmatprep.subr.mxu0 0.0
    %362 = vmatpush1.msra.mxu0 %v308
    %363 = vmatprep.subr.mxu0 0.0
    %364 = vmatpush1.msra.mxu0 %v307
    %365 = vmatprep.subr.mxu0 0.0
    %366 = vmatpush2.msra.mxu0 0.0
    %367 = vmatprep.subr.mxu0 0.0
    %368 = vmatpush2.msra.mxu0 0.0
    %369 = vmatprep.subr.mxu0 0.0
    %370 = vmatpush2.msra.mxu0 0.0
    %371 = vmatprep.subr.mxu0 0.0
    %372 = vmatpush2.msra.mxu0 0.0
    %373 = vmatprep.subr.mxu0 0.0
    %374 = vmatpush2.msra.mxu0 0.0
    %375 = vmatprep.subr.mxu0 0.0
    %376 = vmatpush2.msra.mxu0 0.0
    %377 = vmatprep.subr.mxu0 0.0
    %378 = vmatpush2.msra.mxu0 0.0
    %379 = vmatprep.subr.mxu0 0.0
    %380 = vmatpush2.msra.mxu0 0.0
    %381 = vmatprep.subr.mxu0 0.0
    %382 = vmatpush2.msra.mxu0 0.0
    %383 = vmatprep.subr.mxu0 0.0
    %384 = vmatpush2.msra.mxu0 0.0
    %385 = vmatprep.subr.mxu0 0.0
    %386 = vmatpush2.msra.mxu0 0.0
    %387 = vmatprep.subr.mxu0 0.0
    %388 = vmatpush2.msra.mxu0 0.0
    %389 = vmatprep.subr.mxu0 0.0
    %390 = vmatpush2.msra.mxu0 0.0
    %391 = vmatprep.subr.mxu0 0.0
    %392 = vmatpush2.msra.mxu0 0.0
    %393 = vmatprep.subr.mxu0 0.0
    %394 = vmatpush2.msra.mxu0 0.0
    %395 = vmatprep.subr.mxu0 0.0
    %396 = vmatpush2.msra.mxu0 0.0
    %397 = vmatprep.mubr.f32.mxu0 0.0
    %398 = vmatmul.mubr.f32.gmra.mxu0 %v316
    %v399 = vpop.f32.mrf.mxu0
    %v400 = vadd.f32 0.0, %v399
    %v401 = vpop.f32.mrf.mxu0
    %402 = vmatprep.mubr.f32.mxu0 0.0
    %403 = vmatmul.mubr.f32.gmra.mxu0 %v319
    %v404 = vpop.f32.mrf.mxu0
    %v405 = vadd.f32 0.0, %v404
    %v406 = vpop.f32.mrf.mxu0
    %407 = vmatprep.mubr.f32.mxu0 0.0
    %408 = vmatmul.mubr.f32.gmra.mxu0 %v322
    %v409 = vpop.f32.mrf.mxu0
    %v410 = vadd.f32 0.0, %v409
    %v411 = vpop.f32.mrf.mxu0
    %412 = vmatprep.mubr.f32.mxu0 0.0
    %413 = vmatmul.mubr.f32.gmra.mxu0 %v325
    %v414 = vpop.f32.mrf.mxu0
    %v415 = vadd.f32 0.0, %v414
    %v416 = vpop.f32.mrf.mxu0
    %417 = vmatprep.mubr.f32.mxu0 0.0
    %418 = vmatmul.mubr.f32.gmra.mxu0 %v328
    %v419 = vpop.f32.mrf.mxu0
    %v420 = vadd.f32 0.0, %v419
    %v421 = vpop.f32.mrf.mxu0
    %422 = vmatprep.mubr.f32.mxu0 0.0
    %423 = vmatmul.mubr.f32.gmra.mxu0 %v331
    %v424 = vpop.f32.mrf.mxu0
    %v425 = vadd.f32 0.0, %v424
    %v426 = vpop.f32.mrf.mxu0
    %427 = vdwg.mxu0
    %v428 = vadd.f32 %v273, %v400
    %v429 = vadd.f32 %v278, %v405
    %v430 = vadd.f32 %v283, %v410
    %v431 = vadd.f32 %v288, %v415
    %v432 = vadd.f32 %v293, %v420
    %v433 = vadd.f32 %v298, %v425
    %v434 = vld [vmem:[#allocation2 + $0x3] sm:$0xff]
    %v435 = vld [vmem:[#allocation2 + $0xb] sm:$0xff]
    %v436 = vld [vmem:[#allocation2 + $0x13] sm:$0xff]
    %v437 = vld [vmem:[#allocation2 + $0x1b] sm:$0xff]
    %v438 = vld [vmem:[#allocation2 + $0x23] sm:$0xff]
    %v439 = vld [vmem:[#allocation2 + $0x2b] sm:$0xff]
    %v440 = vld [vmem:[#allocation3 + $0xc0] sm:$0xff]
    %v441 = vld [vmem:[#allocation3 + $0xc8] sm:$0xff]
    %v442 = vld [vmem:[#allocation3 + $0xd0] sm:$0xff]
    %v443 = vld [vmem:[#allocation3 + $0xd8] sm:$0xff]
    %v444 = vld [vmem:[#allocation3 + $0xe0] sm:$0xff]
    %v445 = vld [vmem:[#allocation3 + $0xe8] sm:$0xff]
    %v446 = vld [vmem:[#allocation3 + $0xf0] sm:$0xff]
    %v447 = vld [vmem:[#allocation3 + $0xf8] sm:$0xff]
    %v449 = vsel %vm33, %v434, 0
    %v452 = vsel %vm33, %v435, 0
    %v455 = vsel %vm33, %v436, 0
    %v458 = vsel %vm33, %v437, 0
    %v461 = vsel %vm33, %v438, 0
    %v464 = vsel %vm33, %v439, 0
    %466 = vmatprep.subr.mxu0 0.0
    %467 = vmatpush1.msra.mxu0 0.0
    %468 = vmatprep.subr.mxu0 0.0
    %469 = vmatpush1.msra.mxu0 0.0
    %470 = vmatprep.subr.mxu0 0.0
    %471 = vmatpush1.msra.mxu0 0.0
    %472 = vmatprep.subr.mxu0 0.0
    %473 = vmatpush1.msra.mxu0 0.0
    %474 = vmatprep.subr.mxu0 0.0
    %475 = vmatpush1.msra.mxu0 0.0
    %476 = vmatprep.subr.mxu0 0.0
    %477 = vmatpush1.msra.mxu0 0.0
    %478 = vmatprep.subr.mxu0 0.0
    %479 = vmatpush1.msra.mxu0 0.0
    %480 = vmatprep.subr.mxu0 0.0
    %481 = vmatpush1.msra.mxu0 0.0
    %482 = vmatprep.subr.mxu0 0.0
    %483 = vmatpush1.msra.mxu0 %v447
    %484 = vmatprep.subr.mxu0 0.0
    %485 = vmatpush1.msra.mxu0 %v446
    %486 = vmatprep.subr.mxu0 0.0
    %487 = vmatpush1.msra.mxu0 %v445
    %488 = vmatprep.subr.mxu0 0.0
    %489 = vmatpush1.msra.mxu0 %v444
    %490 = vmatprep.subr.mxu0 0.0
    %491 = vmatpush1.msra.mxu0 %v443
    %492 = vmatprep.subr.mxu0 0.0
    %493 = vmatpush1.msra.mxu0 %v442
    %494 = vmatprep.subr.mxu0 0.0
    %495 = vmatpush1.msra.mxu0 %v441
    %496 = vmatprep.subr.mxu0 0.0
    %497 = vmatpush1.msra.mxu0 %v440
    %498 = vmatprep.subr.mxu0 0.0
    %499 = vmatpush2.msra.mxu0 0.0
    %500 = vmatprep.subr.mxu0 0.0
    %501 = vmatpush2.msra.mxu0 0.0
    %502 = vmatprep.subr.mxu0 0.0
    %503 = vmatpush2.msra.mxu0 0.0
    %504 = vmatprep.subr.mxu0 0.0
    %505 = vmatpush2.msra.mxu0 0.0
    %506 = vmatprep.subr.mxu0 0.0
    %507 = vmatpush2.msra.mxu0 0.0
    %508 = vmatprep.subr.mxu0 0.0
    %509 = vmatpush2.msra.mxu0 0.0
    %510 = vmatprep.subr.mxu0 0.0
    %511 = vmatpush2.msra.mxu0 0.0
    %512 = vmatprep.subr.mxu0 0.0
    %513 = vmatpush2.msra.mxu0 0.0
    %514 = vmatprep.subr.mxu0 0.0
    %515 = vmatpush2.msra.mxu0 0.0
    %516 = vmatprep.subr.mxu0 0.0
    %517 = vmatpush2.msra.mxu0 0.0
    %518 = vmatprep.subr.mxu0 0.0
    %519 = vmatpush2.msra.mxu0 0.0
    %520 = vmatprep.subr.mxu0 0.0
    %521 = vmatpush2.msra.mxu0 0.0
    %522 = vmatprep.subr.mxu0 0.0
    %523 = vmatpush2.msra.mxu0 0.0
    %524 = vmatprep.subr.mxu0 0.0
    %525 = vmatpush2.msra.mxu0 0.0
    %526 = vmatprep.subr.mxu0 0.0
    %527 = vmatpush2.msra.mxu0 0.0
    %528 = vmatprep.subr.mxu0 0.0
    %529 = vmatpush2.msra.mxu0 0.0
    %530 = vmatprep.mubr.f32.mxu0 0.0
    %531 = vmatmul.mubr.f32.gmra.mxu0 %v449
    %v532 = vpop.f32.mrf.mxu0
    %v533 = vadd.f32 0.0, %v532
    %v534 = vpop.f32.mrf.mxu0
    %535 = vmatprep.mubr.f32.mxu0 0.0
    %536 = vmatmul.mubr.f32.gmra.mxu0 %v452
    %v537 = vpop.f32.mrf.mxu0
    %v538 = vadd.f32 0.0, %v537
    %v539 = vpop.f32.mrf.mxu0
    %540 = vmatprep.mubr.f32.mxu0 0.0
    %541 = vmatmul.mubr.f32.gmra.mxu0 %v455
    %v542 = vpop.f32.mrf.mxu0
    %v543 = vadd.f32 0.0, %v542
    %v544 = vpop.f32.mrf.mxu0
    %545 = vmatprep.mubr.f32.mxu0 0.0
    %546 = vmatmul.mubr.f32.gmra.mxu0 %v458
    %v547 = vpop.f32.mrf.mxu0
    %v548 = vadd.f32 0.0, %v547
    %v549 = vpop.f32.mrf.mxu0
    %550 = vmatprep.mubr.f32.mxu0 0.0
    %551 = vmatmul.mubr.f32.gmra.mxu0 %v461
    %v552 = vpop.f32.mrf.mxu0
    %v553 = vadd.f32 0.0, %v552
    %v554 = vpop.f32.mrf.mxu0
    %555 = vmatprep.mubr.f32.mxu0 0.0
    %556 = vmatmul.mubr.f32.gmra.mxu0 %v464
    %v557 = vpop.f32.mrf.mxu0
    %v558 = vadd.f32 0.0, %v557
    %v559 = vpop.f32.mrf.mxu0
    %560 = vdwg.mxu0
    %v561 = vadd.f32 %v428, %v533
    %v562 = vadd.f32 %v429, %v538
    %v563 = vadd.f32 %v430, %v543
    %v564 = vadd.f32 %v431, %v548
    %v565 = vadd.f32 %v432, %v553
    %v566 = vadd.f32 %v433, %v558
    %v567 = vld [vmem:[#allocation2 + $0x4] sm:$0xff]
    %v568 = vld [vmem:[#allocation2 + $0xc] sm:$0xff]
    %v569 = vld [vmem:[#allocation2 + $0x14] sm:$0xff]
    %v570 = vld [vmem:[#allocation2 + $0x1c] sm:$0xff]
    %v571 = vld [vmem:[#allocation2 + $0x24] sm:$0xff]
    %v572 = vld [vmem:[#allocation2 + $0x2c] sm:$0xff]
    %v573 = vld [vmem:[#allocation3 + $0x100] sm:$0xff]
    %v574 = vld [vmem:[#allocation3 + $0x108] sm:$0xff]
    %v575 = vld [vmem:[#allocation3 + $0x110] sm:$0xff]
    %v576 = vld [vmem:[#allocation3 + $0x118] sm:$0xff]
    %v577 = vld [vmem:[#allocation3 + $0x120] sm:$0xff]
    %v578 = vld [vmem:[#allocation3 + $0x128] sm:$0xff]
    %v579 = vld [vmem:[#allocation3 + $0x130] sm:$0xff]
    %v580 = vld [vmem:[#allocation3 + $0x138] sm:$0xff]
    %v582 = vsel %vm33, %v567, 0
    %v585 = vsel %vm33, %v568, 0
    %v588 = vsel %vm33, %v569, 0
    %v591 = vsel %vm33, %v570, 0
    %v594 = vsel %vm33, %v571, 0
    %v597 = vsel %vm33, %v572, 0
    %599 = vmatprep.subr.mxu0 0.0
    %600 = vmatpush1.msra.mxu0 0.0
    %601 = vmatprep.subr.mxu0 0.0
    %602 = vmatpush1.msra.mxu0 0.0
    %603 = vmatprep.subr.mxu0 0.0
    %604 = vmatpush1.msra.mxu0 0.0
    %605 = vmatprep.subr.mxu0 0.0
    %606 = vmatpush1.msra.mxu0 0.0
    %607 = vmatprep.subr.mxu0 0.0
    %608 = vmatpush1.msra.mxu0 0.0
    %609 = vmatprep.subr.mxu0 0.0
    %610 = vmatpush1.msra.mxu0 0.0
    %611 = vmatprep.subr.mxu0 0.0
    %612 = vmatpush1.msra.mxu0 0.0
    %613 = vmatprep.subr.mxu0 0.0
    %614 = vmatpush1.msra.mxu0 0.0
    %615 = vmatprep.subr.mxu0 0.0
    %616 = vmatpush1.msra.mxu0 %v580
    %617 = vmatprep.subr.mxu0 0.0
    %618 = vmatpush1.msra.mxu0 %v579
    %619 = vmatprep.subr.mxu0 0.0
    %620 = vmatpush1.msra.mxu0 %v578
    %621 = vmatprep.subr.mxu0 0.0
    %622 = vmatpush1.msra.mxu0 %v577
    %623 = vmatprep.subr.mxu0 0.0
    %624 = vmatpush1.msra.mxu0 %v576
    %625 = vmatprep.subr.mxu0 0.0
    %626 = vmatpush1.msra.mxu0 %v575
    %627 = vmatprep.subr.mxu0 0.0
    %628 = vmatpush1.msra.mxu0 %v574
    %629 = vmatprep.subr.mxu0 0.0
    %630 = vmatpush1.msra.mxu0 %v573
    %631 = vmatprep.subr.mxu0 0.0
    %632 = vmatpush2.msra.mxu0 0.0
    %633 = vmatprep.subr.mxu0 0.0
    %634 = vmatpush2.msra.mxu0 0.0
    %635 = vmatprep.subr.mxu0 0.0
    %636 = vmatpush2.msra.mxu0 0.0
    %637 = vmatprep.subr.mxu0 0.0
    %638 = vmatpush2.msra.mxu0 0.0
    %639 = vmatprep.subr.mxu0 0.0
    %640 = vmatpush2.msra.mxu0 0.0
    %641 = vmatprep.subr.mxu0 0.0
    %642 = vmatpush2.msra.mxu0 0.0
    %643 = vmatprep.subr.mxu0 0.0
    %644 = vmatpush2.msra.mxu0 0.0
    %645 = vmatprep.subr.mxu0 0.0
    %646 = vmatpush2.msra.mxu0 0.0
    %647 = vmatprep.subr.mxu0 0.0
    %648 = vmatpush2.msra.mxu0 0.0
    %649 = vmatprep.subr.mxu0 0.0
    %650 = vmatpush2.msra.mxu0 0.0
    %651 = vmatprep.subr.mxu0 0.0
    %652 = vmatpush2.msra.mxu0 0.0
    %653 = vmatprep.subr.mxu0 0.0
    %654 = vmatpush2.msra.mxu0 0.0
    %655 = vmatprep.subr.mxu0 0.0
    %656 = vmatpush2.msra.mxu0 0.0
    %657 = vmatprep.subr.mxu0 0.0
    %658 = vmatpush2.msra.mxu0 0.0
    %659 = vmatprep.subr.mxu0 0.0
    %660 = vmatpush2.msra.mxu0 0.0
    %661 = vmatprep.subr.mxu0 0.0
    %662 = vmatpush2.msra.mxu0 0.0
    %663 = vmatprep.mubr.f32.mxu0 0.0
    %664 = vmatmul.mubr.f32.gmra.mxu0 %v582
    %v665 = vpop.f32.mrf.mxu0
    %v666 = vadd.f32 0.0, %v665
    %v667 = vpop.f32.mrf.mxu0
    %668 = vmatprep.mubr.f32.mxu0 0.0
    %669 = vmatmul.mubr.f32.gmra.mxu0 %v585
    %v670 = vpop.f32.mrf.mxu0
    %v671 = vadd.f32 0.0, %v670
    %v672 = vpop.f32.mrf.mxu0
    %673 = vmatprep.mubr.f32.mxu0 0.0
    %674 = vmatmul.mubr.f32.gmra.mxu0 %v588
    %v675 = vpop.f32.mrf.mxu0
    %v676 = vadd.f32 0.0, %v675
    %v677 = vpop.f32.mrf.mxu0
    %678 = vmatprep.mubr.f32.mxu0 0.0
    %679 = vmatmul.mubr.f32.gmra.mxu0 %v591
    %v680 = vpop.f32.mrf.mxu0
    %v681 = vadd.f32 0.0, %v680
    %v682 = vpop.f32.mrf.mxu0
    %683 = vmatprep.mubr.f32.mxu0 0.0
    %684 = vmatmul.mubr.f32.gmra.mxu0 %v594
    %v685 = vpop.f32.mrf.mxu0
    %v686 = vadd.f32 0.0, %v685
    %v687 = vpop.f32.mrf.mxu0
    %688 = vmatprep.mubr.f32.mxu0 0.0
    %689 = vmatmul.mubr.f32.gmra.mxu0 %v597
    %v690 = vpop.f32.mrf.mxu0
    %v691 = vadd.f32 0.0, %v690
    %v692 = vpop.f32.mrf.mxu0
    %693 = vdwg.mxu0
    %v694 = vadd.f32 %v561, %v666
    %v695 = vadd.f32 %v562, %v671
    %v696 = vadd.f32 %v563, %v676
    %v697 = vadd.f32 %v564, %v681
    %v698 = vadd.f32 %v565, %v686
    %v699 = vadd.f32 %v566, %v691
    %v700 = vld [vmem:[#allocation3 + $0x140] sm:$0x1]
    %v701 = vlaneseq
    %v702 = vshrl.u32 %v701, 7
    %v703 = vsub.s32 0, %v702
    %v704 = vrot.slane %v700, %v703
    %v705 = vadd.f32 %v694, %v704
    %v706 = vadd.f32 %v695, %v704
    %v707 = vadd.f32 %v696, %v704
    %v708 = vadd.f32 %v697, %v704
    %v709 = vadd.f32 %v698, %v704
    %v710 = vadd.f32 %v699, %v704
    %v711 = vmax.f32 %v705, 0.0
    %v712 = vmax.f32 %v706, 0.0
    %v713 = vmax.f32 %v707, 0.0
    %v714 = vmax.f32 %v708, 0.0
    %v715 = vmax.f32 %v709, 0.0
    %v716 = vmax.f32 %v710, 0.0
    %v717 = vlaneseq
    %v718 = vand.u32 %v717, 127
    %vm719 = vcmp.ge.s32.totalorder %v718, 10
    %vm720 = vcmp.lt.s32.totalorder %v718, 20
    %vm721 = vmand %vm719, %vm720
    %v722 = vmax.f32 %v711, %v712
    %v723 = vrot.slane %v722, 4
    %v724 = vmax.f32 %v722, %v723
    %v725 = vrot.slane %v724, 2
    %v726 = vmax.f32 %v724, %v725
    %v727 = vrot.slane %v726, 1
    %v728 = vmax.f32 %v726, %v727
    %v729 = vsel %vm721, %v713, 0.0
    %v730 = vmax.f32 %v728, %v729
    %v731 = vmax.f32 %v714, %v715
    %v732 = vrot.slane %v731, 4
    %v733 = vmax.f32 %v731, %v732
    %v734 = vrot.slane %v733, 2
    %v735 = vmax.f32 %v733, %v734
    %v736 = vrot.slane %v735, 1
    %v737 = vmax.f32 %v735, %v736
    %v738 = vsel %vm721, %v716, 0.0
    %v739 = vmax.f32 %v737, %v738
    %v741 = vrot.slane %v739, 7
    %vm743 = vcmask 1040384
    %v744 = vsel %vm743, %v730, %v741
    %v745 = vld [vmem:[%s2] sm:$0xff]
    %v746 = vld [vmem:[%s2 + $0x8] sm:$0xff]
    %v747 = vld [vmem:[%s2 + $0x10] sm:$0xff]
    %v748 = vld [vmem:[%s2 + $0x18] sm:$0xff]
    %v749 = vld [vmem:[%s2 + $0x20] sm:$0xff]
    %v750 = vld [vmem:[%s2 + $0x28] sm:$0xff]
    %v751 = vld [vmem:[%s2 + $0x30] sm:$0xff]
    %v752 = vld [vmem:[%s2 + $0x38] sm:$0xff]
    %v753 = vld [vmem:[%s2 + $0x40] sm:$0xff]
    %v754 = vld [vmem:[%s2 + $0x48] sm:$0xff]
    %v755 = vld [vmem:[%s2 + $0x50] sm:$0xff]
    %v756 = vld [vmem:[%s2 + $0x58] sm:$0xff]
    %v757 = vld [vmem:[%s2 + $0x60] sm:$0xff]
    %v758 = vld [vmem:[%s2 + $0x68] sm:$0xff]
    %v759 = vld [vmem:[%s2 + $0x70] sm:$0xff]
    %v760 = vld [vmem:[%s2 + $0x78] sm:$0xff]
    %v761 = vld [vmem:[%s2 + $0x80] sm:$0x1]
    %v762 = vlaneseq
    %v763 = vshrl.u32 %v762, 7
    %v764 = vsub.s32 0, %v763
    %v765 = vrot.slane %v761, %v764
    %766 = vmatprep.subr.mxu0 0.0
    %767 = vmatpush1.msra.mxu0 %v760
    %768 = vmatprep.subr.mxu0 0.0
    %769 = vmatpush1.msra.mxu0 %v759
    %770 = vmatprep.subr.mxu0 0.0
    %771 = vmatpush1.msra.mxu0 %v758
    %772 = vmatprep.subr.mxu0 0.0
    %773 = vmatpush1.msra.mxu0 %v757
    %774 = vmatprep.subr.mxu0 0.0
    %775 = vmatpush1.msra.mxu0 %v756
    %776 = vmatprep.subr.mxu0 0.0
    %777 = vmatpush1.msra.mxu0 %v755
    %778 = vmatprep.subr.mxu0 0.0
    %779 = vmatpush1.msra.mxu0 %v754
    %780 = vmatprep.subr.mxu0 0.0
    %781 = vmatpush1.msra.mxu0 %v753
    %782 = vmatprep.subr.mxu0 0.0
    %783 = vmatpush1.msra.mxu0 %v752
    %784 = vmatprep.subr.mxu0 0.0
    %785 = vmatpush1.msra.mxu0 %v751
    %786 = vmatprep.subr.mxu0 0.0
    %787 = vmatpush1.msra.mxu0 %v750
    %788 = vmatprep.subr.mxu0 0.0
    %789 = vmatpush1.msra.mxu0 %v749
    %790 = vmatprep.subr.mxu0 0.0
    %791 = vmatpush1.msra.mxu0 %v748
    %792 = vmatprep.subr.mxu0 0.0
    %793 = vmatpush1.msra.mxu0 %v747
    %794 = vmatprep.subr.mxu0 0.0
    %795 = vmatpush1.msra.mxu0 %v746
    %796 = vmatprep.subr.mxu0 0.0
    %797 = vmatpush1.msra.mxu0 %v745
    %798 = vmatprep.subr.mxu0 0.0
    %799 = vmatpush2.msra.mxu0 0.0
    %800 = vmatprep.subr.mxu0 0.0
    %801 = vmatpush2.msra.mxu0 0.0
    %802 = vmatprep.subr.mxu0 0.0
    %803 = vmatpush2.msra.mxu0 0.0
    %804 = vmatprep.subr.mxu0 0.0
    %805 = vmatpush2.msra.mxu0 0.0
    %806 = vmatprep.subr.mxu0 0.0
    %807 = vmatpush2.msra.mxu0 0.0
    %808 = vmatprep.subr.mxu0 0.0
    %809 = vmatpush2.msra.mxu0 0.0
    %810 = vmatprep.subr.mxu0 0.0
    %811 = vmatpush2.msra.mxu0 0.0
    %812 = vmatprep.subr.mxu0 0.0
    %813 = vmatpush2.msra.mxu0 0.0
    %814 = vmatprep.subr.mxu0 0.0
    %815 = vmatpush2.msra.mxu0 0.0
    %816 = vmatprep.subr.mxu0 0.0
    %817 = vmatpush2.msra.mxu0 0.0
    %818 = vmatprep.subr.mxu0 0.0
    %819 = vmatpush2.msra.mxu0 0.0
    %820 = vmatprep.subr.mxu0 0.0
    %821 = vmatpush2.msra.mxu0 0.0
    %822 = vmatprep.subr.mxu0 0.0
    %823 = vmatpush2.msra.mxu0 0.0
    %824 = vmatprep.subr.mxu0 0.0
    %825 = vmatpush2.msra.mxu0 0.0
    %826 = vmatprep.subr.mxu0 0.0
    %827 = vmatpush2.msra.mxu0 0.0
    %828 = vmatprep.subr.mxu0 0.0
    %829 = vmatpush2.msra.mxu0 0.0
    %830 = vmatprep.mubr.f32.mxu0 0.0
    %831 = vmatmul.mubr.f32.gmra.mxu0 %v744
    %v832 = vpop.f32.mrf.mxu0
    %v833 = vadd.f32 %v765, %v832
    %v834 = vpop.f32.mrf.mxu0
    %835 = vdwg.mxu0
    %vm836 = vcmask 9216
    %837 = vst.msk [vmem:[#allocation6] sm:$0x3] %vm836, %v833
    // Predicated region
    $region18: #{tpu_custom_call.1} parent=1 // pred_check
      _
    $region19: #{tpu_custom_call.1} parent=1 // pred_check_branch
      %839 = sbr.rel (0) target = $region21
    $region20: #{tpu_custom_call.1} parent=1 // pred_region
      %s841 = ssub.s32 32, 32
      %842 = vsyncadd [#allocation5], %s841
      %s844 = sshll.u32 [#allocation6], 4
      %s845 = int_to_ptr.vmem [resolvable:$true] %s844
      %847 = dma.vmem_to_hbm [thread:$0]  %s845, 32, %s3, [#allocation5]
    $region21: #{tpu_custom_call.1} parent=1 // pred_fallthru
      _
    // Predicated region
    $region22: #{tpu_custom_call.1} parent=1 // pred_check
      _
    $region23: #{tpu_custom_call.1} parent=1 // pred_check_branch
      %849 = sbr.rel (0) target = $region25
    $region24: #{tpu_custom_call.1} parent=1 // pred_region
      %850 = dma.done [#allocation5], 32
    $region25: #{tpu_custom_call.1} parent=1 // pred_fallthru
      _
    %851 = vsyncpa [#allocation4], 1
    %852 = vsyncpa [#allocation5], 1

</llo_original>
